<compile_context>
chip_gen: v7x
topology: tpu7x:2x2x1
jax: 0.10.0
libtpu: 0.0.40
codegen_flags: <defaults>
</compile_context>

<pallas_src>
import functools

import jax
import jax.numpy as jnp
from jax.experimental import pallas as pl
from jax.experimental.pallas import tpu as pltpu

_LANE = 128       # lane width: hidden/output feature dims padded to a multiple of this
_SUBLANE = 8      # sublane width: row-tile multiple
_NEG_INF = -1e30  # bias for padded output columns -> exp underflows to exactly 0
_SPLIT_THRESHOLD = 512  # force >=2 row tiles at/above this batch (v7x megacore)


def _round_up(x: int, m: int) -> int:
    return ((x + m - 1) // m) * m


def _cdiv(a: int, b: int) -> int:
    return -(-a // b)


def _select_row_tile(batch: int, max_block_rows: int):
    """Pick (tm, n_tiles) so that padding waste is <8 rows/tile and large batches
    produce >=2 grid steps (both v7x TensorCores via the 'parallel' axis)."""
    max_block_rows = max(_SUBLANE, _round_up(max_block_rows, _SUBLANE))
    n_tiles = max(1, _cdiv(batch, max_block_rows))
    if n_tiles == 1 and batch >= _SPLIT_THRESHOLD:
        n_tiles = 2
    tm = _round_up(_cdiv(batch, n_tiles), _SUBLANE)
    return tm, n_tiles


def ffn_kernel(x_ref, w1_ref, b1_ref, w2_ref, b2_ref, out_ref):
    # x tile arrives as f32 (tm, F); cast to bf16 here (VPU) instead of a wrapper-side pass.
    x = x_ref[...].astype(jnp.bfloat16)
    # hidden = relu(x @ W1 + b1): bf16 operands on the MXU, f32 accumulation + f32 bias/relu.
    h = jnp.dot(x, w1_ref[...], preferred_element_type=jnp.float32)
    h = jnp.maximum(h + b1_ref[...], 0.0)
    # logits = h @ W2 + b2.  Padded output columns have bias -1e30 -> zero prob after softmax.
    logits = jnp.dot(h.astype(jnp.bfloat16), w2_ref[...],
                     preferred_element_type=jnp.float32) + b2_ref[...]
    # Numerically stable softmax over the lane-dense 128-wide class axis, in f32.
    m = jnp.max(logits, axis=1, keepdims=True)
    e = jnp.exp(logits - m)
    denom = jnp.sum(e, axis=1, keepdims=True)
    out_ref[...] = (e * pl.reciprocal(denom, approx=True)).astype(out_ref.dtype)


def pad_ffn_params(w1, b1, w2, b2):
    """One-time padding/cast of the parameters (call outside the per-step jit path).

    w1: (F, H), b1: (1, H) or (H,), w2: (H, O), b2: (1, O) or (O,).
    Returns bf16 weights / f32 biases with H and O padded to multiples of 128;
    padded output-bias columns get -1e30 so softmax puts zero mass on them.
    """
    F, H = w1.shape
    O = w2.shape[1]
    Hp = _round_up(H, _LANE)
    Op = _round_up(O, _LANE)
    w1p = jnp.zeros((F, Hp), jnp.bfloat16).at[:, :H].set(w1.astype(jnp.bfloat16))
    b1p = jnp.zeros((1, Hp), jnp.float32).at[:, :H].set(
        jnp.asarray(b1, jnp.float32).reshape(1, H))
    w2p = jnp.zeros((Hp, Op), jnp.bfloat16).at[:H, :O].set(w2.astype(jnp.bfloat16))
    b2p = jnp.full((1, Op), _NEG_INF, jnp.float32).at[:, :O].set(
        jnp.asarray(b2, jnp.float32).reshape(1, O))
    return w1p, b1p, w2p, b2p


def feedforward(x, w1p, b1p, w2p, b2p, *, num_outputs: int, max_block_rows: int = 1024):
    """x: (B, F) f32; padded params from pad_ffn_params() -> probs (B, num_outputs) f32."""
    B, F = x.shape
    Hp = w1p.shape[1]
    Op = w2p.shape[1]

    tm, n_tiles = _select_row_tile(B, max_block_rows)
    Bp = tm * n_tiles
    # Only the batch dim is (lightly) padded; x keeps its native F columns and f32 dtype.
    xp = x if Bp == B else jnp.pad(x, ((0, Bp - B), (0, 0)))

    out = pl.pallas_call(
        ffn_kernel,
        out_shape=jax.ShapeDtypeStruct((Bp, Op), jnp.bfloat16),
        grid_spec=pltpu.PrefetchScalarGridSpec(
            num_scalar_prefetch=0,
            grid=(n_tiles,),
            in_specs=[
                pl.BlockSpec((tm, F), lambda i: (i, 0)),    # x: row-tiled, full F (legal: == array dim)
                pl.BlockSpec((F, Hp), lambda i: (0, 0)),    # W1: resident in VMEM across the grid
                pl.BlockSpec((1, Hp), lambda i: (0, 0)),    # b1: resident
                pl.BlockSpec((Hp, Op), lambda i: (0, 0)),   # W2: resident
                pl.BlockSpec((1, Op), lambda i: (0, 0)),    # b2: resident
            ],
            out_specs=pl.BlockSpec((tm, Op), lambda i: (i, 0)),
        ),
        compiler_params=pltpu.CompilerParams(
            dimension_semantics=("parallel",),              # batch tiles are independent
        ),
    )(xp, w1p, b1p, w2p, b2p)
    # Slice away padded rows / padded output classes; return f32 like the PyTorch module.
    return out[:B, :num_outputs].astype(jnp.float32)


def init_linear_params(key, in_features, out_features):
    """Deterministic init matching PyTorch nn.Linear's U(-1/sqrt(in), 1/sqrt(in))."""
    kw, kb = jax.random.split(key)
    bound = 1.0 / jnp.sqrt(jnp.float32(in_features))
    # Stored as (in, out) = transpose of PyTorch's (out, in) weight.
    w = jax.random.uniform(kw, (in_features, out_features), jnp.float32, -bound, bound)
    b = jax.random.uniform(kb, (1, out_features), jnp.float32, -bound, bound)
    return w, b


def _reference_probs(x, w1, b1, w2, b2):
    """Pure-JAX reference with the same bf16-operand / f32-accumulate recipe."""
    h = jnp.dot(x.astype(jnp.bfloat16), w1.astype(jnp.bfloat16),
                preferred_element_type=jnp.float32) + b1
    h = jnp.maximum(h, 0.0)
    logits = jnp.dot(h.astype(jnp.bfloat16), w2.astype(jnp.bfloat16),
                     preferred_element_type=jnp.float32) + b2
    return jax.nn.softmax(logits, axis=1)


if __name__ == "__main__":
    # FeedForward(hidden_size=32, num_outputs=10, num_inputs=64) at small batch.
    batch, num_inputs, hidden_size, num_outputs = 8, 64, 32, 10

    key = jax.random.PRNGKey(0)
    kx, k1, k2, kx2 = jax.random.split(key, 4)

    x = jax.random.normal(kx, (batch, num_inputs), jnp.float32)
    w1, b1 = init_linear_params(k1, num_inputs, hidden_size)
    w2, b2 = init_linear_params(k2, hidden_size, num_outputs)

    # Pad/cast the parameters once, outside the per-call jit path.
    w1p, b1p, w2p, b2p = pad_ffn_params(w1, b1, w2, b2)

    ff = jax.jit(functools.partial(feedforward, num_outputs=num_outputs))

    probs = jax.block_until_ready(ff(x, w1p, b1p, w2p, b2p))
    assert probs.shape == (batch, num_outputs)

    # Check against a matching bf16/f32 reference and against a pure-f32 reference.
    # (Kernel stores bf16 probs and uses approx reciprocal -> slightly looser tolerances.)
    probs_ref = _reference_probs(x, w1, b1, w2, b2)
    probs_f32 = jax.nn.softmax(jnp.maximum(x @ w1 + b1, 0.0) @ w2 + b2, axis=1)
    assert jnp.allclose(probs, probs_ref, atol=1.5e-2), "mismatch vs bf16-matched reference"
    assert jnp.allclose(probs, probs_f32, atol=3e-2), "mismatch vs f32 reference"
    assert jnp.allclose(jnp.sum(probs, axis=1), 1.0, atol=1e-2), "rows do not sum to 1"

    # Exercise the multi-tile gridded path (batch not a multiple of the row tile; grid > 1).
    big_batch = 300
    xb = jax.random.normal(kx2, (big_batch, num_inputs), jnp.float32)
    ff_big = jax.jit(functools.partial(feedforward, num_outputs=num_outputs,
                                       max_block_rows=128))
    probs_big = jax.block_until_ready(ff_big(xb, w1p, b1p, w2p, b2p))
    probs_big_ref = _reference_probs(xb, w1, b1, w2, b2)
    assert probs_big.shape == (big_batch, num_outputs)
    assert jnp.allclose(probs_big, probs_big_ref, atol=1.5e-2)
    assert jnp.allclose(jnp.sum(probs_big, axis=1), 1.0, atol=1e-2)

    print("KERNEL_OK")
</pallas_src>

<mosaic_0001>
module attributes {stable_mosaic.version = 11 : i64} {
  func.func @ffn_kernel(%arg0: i32, %arg1: memref<8x64xf32, #tpu.memory_space<vmem>>, %arg2: memref<64x128xbf16, #tpu.memory_space<vmem>>, %arg3: memref<1x128xf32, #tpu.memory_space<vmem>>, %arg4: memref<128x128xbf16, #tpu.memory_space<vmem>>, %arg5: memref<1x128xf32, #tpu.memory_space<vmem>>, %arg6: memref<8x128xbf16, #tpu.memory_space<vmem>>) attributes {dimension_semantics = [#tpu.dimension_semantics<parallel>], iteration_bounds = array<i64: 1>, scalar_prefetch = 0 : i64, scratch_operands = 0 : i64, tpu.core_type = #tpu.core_type<tc>, window_params = [{transform_indices = @transform_0, window_bounds = array<i64: 8, 64>}, {pipeline_mode = #tpu.pipeline_mode<synchronous>, transform_indices = @transform_1, window_bounds = array<i64: 64, 128>}, {pipeline_mode = #tpu.pipeline_mode<synchronous>, transform_indices = @transform_2, window_bounds = array<i64: 1, 128>}, {pipeline_mode = #tpu.pipeline_mode<synchronous>, transform_indices = @transform_3, window_bounds = array<i64: 128, 128>}, {pipeline_mode = #tpu.pipeline_mode<synchronous>, transform_indices = @transform_4, window_bounds = array<i64: 1, 128>}, {transform_indices = @transform_5, window_bounds = array<i64: 8, 128>}]} {
    %c0 = arith.constant 0 : index
    %c0_0 = arith.constant 0 : index
    %0 = vector.load %arg1[%c0, %c0_0] : memref<8x64xf32, #tpu.memory_space<vmem>>, vector<8x64xf32>
    %1 = arith.truncf %0 : vector<8x64xf32> to vector<8x64xbf16>
    %c0_1 = arith.constant 0 : index
    %c0_2 = arith.constant 0 : index
    %2 = vector.load %arg2[%c0_1, %c0_2] : memref<64x128xbf16, #tpu.memory_space<vmem>>, vector<64x128xbf16>
    %cst = arith.constant dense<0.000000e+00> : vector<8x128xf32>
    %3 = tpu.matmul %1, %2, %cst {dimension_numbers = #tpu.dot_dimension_numbers<[1], [0], [0], [1], [0, 0, 1, 1], [], []>} : vector<8x64xbf16>, vector<64x128xbf16>, vector<8x128xf32> -> vector<8x128xf32>
    %c0_3 = arith.constant 0 : index
    %c0_4 = arith.constant 0 : index
    %4 = vector.load %arg3[%c0_3, %c0_4] : memref<1x128xf32, #tpu.memory_space<vmem>>, vector<1x128xf32>
    %5 = vector.broadcast %4 : vector<1x128xf32> to vector<8x128xf32>
    %6 = arith.addf %3, %5 : vector<8x128xf32>
    %cst_5 = arith.constant 0.000000e+00 : f32
    %7 = vector.broadcast %cst_5 : f32 to vector<8x128xf32>
    %8 = arith.maximumf %6, %7 : vector<8x128xf32>
    %9 = arith.truncf %8 : vector<8x128xf32> to vector<8x128xbf16>
    %c0_6 = arith.constant 0 : index
    %c0_7 = arith.constant 0 : index
    %10 = vector.load %arg4[%c0_6, %c0_7] : memref<128x128xbf16, #tpu.memory_space<vmem>>, vector<128x128xbf16>
    %cst_8 = arith.constant dense<0.000000e+00> : vector<8x128xf32>
    %11 = tpu.matmul %9, %10, %cst_8 {dimension_numbers = #tpu.dot_dimension_numbers<[1], [0], [0], [1], [0, 0, 1, 1], [], []>} : vector<8x128xbf16>, vector<128x128xbf16>, vector<8x128xf32> -> vector<8x128xf32>
    %c0_9 = arith.constant 0 : index
    %c0_10 = arith.constant 0 : index
    %12 = vector.load %arg5[%c0_9, %c0_10] : memref<1x128xf32, #tpu.memory_space<vmem>>, vector<1x128xf32>
    %13 = vector.broadcast %12 : vector<1x128xf32> to vector<8x128xf32>
    %14 = arith.addf %11, %13 : vector<8x128xf32>
    %cst_11 = arith.constant dense<0xFF800000> : vector<8xf32>
    %15 = vector.multi_reduction <maximumf>, %14, %cst_11 [1] : vector<8x128xf32> to vector<8xf32>
    %16 = vector.shape_cast %15 : vector<8xf32> to vector<8x1xf32>
    %17 = vector.broadcast %16 : vector<8x1xf32> to vector<8x128xf32>
    %18 = arith.subf %14, %17 : vector<8x128xf32>
    %19 = math.exp %18 : vector<8x128xf32>
    %cst_12 = arith.constant dense<0.000000e+00> : vector<8xf32>
    %20 = vector.multi_reduction <add>, %19, %cst_12 [1] : vector<8x128xf32> to vector<8xf32>
    %21 = vector.shape_cast %20 : vector<8xf32> to vector<8x1xf32>
    %22 = tpu.reciprocal %21 {approx = true} : vector<8x1xf32> -> vector<8x1xf32>
    %23 = vector.broadcast %22 : vector<8x1xf32> to vector<8x128xf32>
    %24 = arith.mulf %19, %23 : vector<8x128xf32>
    %25 = arith.truncf %24 : vector<8x128xf32> to vector<8x128xbf16>
    %c0_13 = arith.constant 0 : index
    %c0_14 = arith.constant 0 : index
    %26 = vector.load %arg6[%c0_13, %c0_14] : memref<8x128xbf16, #tpu.memory_space<vmem>>, vector<8x128xbf16>
    tpu.vector_store %arg6[%c0_13, %c0_14], %25 {strides = array<i32>} : memref<8x128xbf16, #tpu.memory_space<vmem>>, vector<8x128xbf16>,
    return
  }
  func.func @transform_0(%arg0: i32) -> (i32, i32) {
    %c0_i32 = arith.constant 0 : i32
    %c0_i32_0 = arith.constant 0 : i32
    return %arg0, %c0_i32 : i32, i32
  }
  func.func @transform_1(%arg0: i32) -> (i32, i32) {
    %c0_i32 = arith.constant 0 : i32
    %c0_i32_0 = arith.constant 0 : i32
    %c0_i32_1 = arith.constant 0 : i32
    return %c0_i32, %c0_i32_0 : i32, i32
  }
  func.func @transform_2(%arg0: i32) -> (i32, i32) {
    %c0_i32 = arith.constant 0 : i32
    %c0_i32_0 = arith.constant 0 : i32
    %c0_i32_1 = arith.constant 0 : i32
    return %c0_i32, %c0_i32_0 : i32, i32
  }
  func.func @transform_3(%arg0: i32) -> (i32, i32) {
    %c0_i32 = arith.constant 0 : i32
    %c0_i32_0 = arith.constant 0 : i32
    %c0_i32_1 = arith.constant 0 : i32
    return %c0_i32, %c0_i32_0 : i32, i32
  }
  func.func @transform_4(%arg0: i32) -> (i32, i32) {
    %c0_i32 = arith.constant 0 : i32
    %c0_i32_0 = arith.constant 0 : i32
    %c0_i32_1 = arith.constant 0 : i32
    return %c0_i32, %c0_i32_0 : i32, i32
  }
  func.func @transform_5(%arg0: i32) -> (i32, i32) {
    %c0_i32 = arith.constant 0 : i32
    %c0_i32_0 = arith.constant 0 : i32
    return %arg0, %c0_i32 : i32, i32
  }
}

</mosaic_0001>

<llo_original>
// kernel: feedforward.1
$region0: #{feedforward.1}
  #allocation0 [shape = 'u32[]', space=smem, size = 0x4, offset = 0x4, fixed_abs, tag = 'smem constant byte address 0x4 - core index']
  #allocation1 [shape = 'u32[144,128]{1,0:T(1,128)}', space=vmem, size = 0x12000, scoped, tag = 'internal scratch']
  %s0 = inlined_call_operand.hbm [shape: f32[8,64], index: 0, kind: input, shape index: {}]
  %s1 = inlined_call_operand.hbm [shape: bf16[64,128], index: 1, kind: input, shape index: {}]
  %s2 = inlined_call_operand.vmem [shape: f32[1,128], index: 2, kind: input, shape index: {}]
  %s3 = inlined_call_operand.hbm [shape: bf16[128,128], index: 3, kind: input, shape index: {}]
  %s4 = inlined_call_operand.vmem [shape: f32[1,128], index: 4, kind: input, shape index: {}]
  %s5 = inlined_call_operand.vmem [shape: bf16[8,128], index: 5, kind: output, shape index: {}]
  %s6 = sld [smem:[#allocation0]]
  $region42: #{feedforward.1} parent=0
    _
  %s8 = ssub.s32 1, %s6
  %s9 = scalar_select 0, %s8, %s6
  $region1: #{feedforward.1} parent=0
    #allocation2 [shape = 'u8[4096]{0}', space=vmem, size = 0x1000, scoped, tag = 'input window, operand 0, single buffered']
    #allocation3 [shape = 's32[1]{0}', space=sflag, size = 0x4, scoped, tag = 'scoped memory for feedforward.1']
    #allocation4 [shape = 'u8[16384]{0}', space=vmem, size = 0x4000, scoped, tag = 'input window, operand 1, single buffered']
    #allocation5 [shape = 's32[1]{0}', space=sflag, size = 0x4, scoped, tag = 'scoped memory for feedforward.1']
    #allocation6 [shape = 'u8[32768]{0}', space=vmem, size = 0x8000, scoped, tag = 'input window, operand 3, single buffered']
    %10 = vsyncpa [#allocation3], 0
    %11 = vsyncpa [#allocation5], 0
    // Predicated region
    $region2: #{feedforward.1} parent=1 // pred_check
      _
    $region3: #{feedforward.1} parent=1 // pred_check_branch
      %13 = sbr.rel (0) target = $region5
    $region4: #{feedforward.1} parent=1 // pred_region
      %s15 = ssub.s32 128, 128
      %16 = vsyncadd [#allocation3], %s15
      %s18 = sshll.u32 [#allocation2], 4
      %s19 = int_to_ptr.vmem [resolvable:$true] %s18
      %21 = dma.hbm_to_vmem [thread:$0]  %s0, 128, %s19, [#allocation3]
    $region5: #{feedforward.1} parent=1 // pred_fallthru
      _
    // Predicated region
    $region6: #{feedforward.1} parent=1 // pred_check
      _
    $region7: #{feedforward.1} parent=1 // pred_check_branch
      %23 = sbr.rel (0) target = $region9
    $region8: #{feedforward.1} parent=1 // pred_region
      %s25 = ssub.s32 512, 512
      %26 = vsyncadd [#allocation5], %s25
      %s27 = sshll.u32 [#allocation4], 4
      %s28 = int_to_ptr.vmem [resolvable:$true] %s27
      %33 = dma.hbm_to_vmem [thread:$0]  %s1, 512, %s28, [#allocation5], 64, 64, 4
    $region9: #{feedforward.1} parent=1 // pred_fallthru
      _
    // Predicated region
    $region10: #{feedforward.1} parent=1 // pred_check
      _
    $region11: #{feedforward.1} parent=1 // pred_check_branch
      %35 = sbr.rel (0) target = $region13
    $region12: #{feedforward.1} parent=1 // pred_region
      _
    $region13: #{feedforward.1} parent=1 // pred_fallthru
      _
    // Predicated region
    $region14: #{feedforward.1} parent=1 // pred_check
      _
    $region15: #{feedforward.1} parent=1 // pred_check_branch
      %37 = sbr.rel (0) target = $region17
    $region16: #{feedforward.1} parent=1 // pred_region
      %s39 = ssub.s32 1024, 1024
      %40 = vsyncadd [#allocation5], %s39
      %s41 = sshll.u32 [#allocation6], 4
      %s42 = int_to_ptr.vmem [resolvable:$true] %s41
      %47 = dma.hbm_to_vmem [thread:$0]  %s3, 1024, %s42, [#allocation5], 64, 64, 4
    $region17: #{feedforward.1} parent=1 // pred_fallthru
      _
    // Predicated region
    $region18: #{feedforward.1} parent=1 // pred_check
      _
    $region19: #{feedforward.1} parent=1 // pred_check_branch
      %49 = sbr.rel (0) target = $region21
    $region20: #{feedforward.1} parent=1 // pred_region
      _
    $region21: #{feedforward.1} parent=1 // pred_fallthru
      _
    // Predicated region
    $region22: #{feedforward.1} parent=1 // pred_check
      _
    $region23: #{feedforward.1} parent=1 // pred_check_branch
      %51 = sbr.rel (0) target = $region25
    $region24: #{feedforward.1} parent=1 // pred_region
      %52 = dma.done [#allocation3], 128
    $region25: #{feedforward.1} parent=1 // pred_fallthru
      _
    // Predicated region
    $region26: #{feedforward.1} parent=1 // pred_check
      _
    $region27: #{feedforward.1} parent=1 // pred_check_branch
      %54 = sbr.rel (0) target = $region29
    $region28: #{feedforward.1} parent=1 // pred_region
      %55 = dma.done [#allocation5], 512
    $region29: #{feedforward.1} parent=1 // pred_fallthru
      _
    // Predicated region
    $region30: #{feedforward.1} parent=1 // pred_check
      _
    $region31: #{feedforward.1} parent=1 // pred_check_branch
      %57 = sbr.rel (0) target = $region33
    $region32: #{feedforward.1} parent=1 // pred_region
      %58 = dma.done [#allocation5], 1024
    $region33: #{feedforward.1} parent=1 // pred_fallthru
      _
    %v60 = vld [vmem:[#allocation2] sm:$0xff]
    %v61 = vpack.c.bf16 %v60, %v60
    %v62 = vld [vmem:[#allocation4] sm:$0xf]
    %v63 = vld [vmem:[#allocation4 + $0x4] sm:$0xf]
    %v64 = vld [vmem:[#allocation4 + $0x8] sm:$0xf]
    %v65 = vld [vmem:[#allocation4 + $0xc] sm:$0xf]
    %v66 = vld [vmem:[#allocation4 + $0x10] sm:$0xf]
    %v67 = vld [vmem:[#allocation4 + $0x14] sm:$0xf]
    %v68 = vld [vmem:[#allocation4 + $0x18] sm:$0xf]
    %v69 = vld [vmem:[#allocation4 + $0x1c] sm:$0xf]
    %v70 = vld [vmem:[%s2] sm:$0x1]
    %v72 = vlaneseq
    %v73 = vshrl.u32 %v72, 7
    %v74 = vsub.s32 0, %v73
    %v75 = vrot.slane %v70, %v74
    %v85 = vunpack.c.l.b16 %v62
    %v86 = vunpack.c.l.b16 %v63
    %v87 = vunpack.c.l.b16 %v64
    %v88 = vunpack.c.l.b16 %v65
    %v89 = vunpack.c.l.b16 %v66
    %v90 = vunpack.c.l.b16 %v67
    %v91 = vunpack.c.l.b16 %v68
    %v92 = vunpack.c.l.b16 %v69
    %v93 = vpack.c.b16 %v86, %v85
    %v94 = vpack.c.b16 %v88, %v87
    %v95 = vpack.c.b16 %v90, %v89
    %v96 = vpack.c.b16 %v92, %v91
    %vm101 = vcmask 523264
    %v103 = vsel %vm101, %v61, 0
    %105 = vmatprep.subr.bf16.mxu0 0
    %106 = vmatpush1.bf16.msra.mxu0 %v93
    %107 = vmatprep.subr.bf16.mxu0 0
    %108 = vmatpush1.bf16.msra.mxu0 %v94
    %109 = vmatprep.subr.bf16.mxu0 0
    %110 = vmatpush1.bf16.msra.mxu0 %v95
    %111 = vmatprep.subr.bf16.mxu0 0
    %112 = vmatpush1.bf16.msra.mxu0 %v96
    %113 = vmatprep.subr.bf16.mxu0 0
    %114 = vmatpush1.bf16.msra.mxu0 0
    %115 = vmatprep.subr.bf16.mxu0 0
    %116 = vmatpush1.bf16.msra.mxu0 0
    %117 = vmatprep.subr.bf16.mxu0 0
    %118 = vmatpush1.bf16.msra.mxu0 0
    %119 = vmatprep.subr.bf16.mxu0 0
    %120 = vmatpush1.bf16.msra.mxu0 0
    %121 = vmatprep.subr.bf16.mxu0 0
    %122 = vmatpush1.bf16.msra.mxu0 0
    %123 = vmatprep.subr.bf16.mxu0 0
    %124 = vmatpush1.bf16.msra.mxu0 0
    %125 = vmatprep.subr.bf16.mxu0 0
    %126 = vmatpush1.bf16.msra.mxu0 0
    %127 = vmatprep.subr.bf16.mxu0 0
    %128 = vmatpush1.bf16.msra.mxu0 0
    %129 = vmatprep.subr.bf16.mxu0 0
    %130 = vmatpush1.bf16.msra.mxu0 0
    %131 = vmatprep.subr.bf16.mxu0 0
    %132 = vmatpush1.bf16.msra.mxu0 0
    %133 = vmatprep.subr.bf16.mxu0 0
    %134 = vmatpush1.bf16.msra.mxu0 0
    %135 = vmatprep.subr.bf16.mxu0 0
    %136 = vmatpush1.bf16.msra.mxu0 0
    %137 = vmatprep.mubr.bf16.mxu0 0
    %138 = vmatmul.mubr.bf16.gmra.mrb[0].mxu0 %v103
    %v139 = vpop.f32.mrb[0].mxu0
    %v140 = vadd.f32 %v75, %v139
    %v141 = vpop.f32.mrb[0].mxu0
    %v142 = vpop.f32.mrb[0].mxu0
    %v143 = vpop.f32.mrb[0].mxu0
    %144 = vdwg.mxu0
    %v145 = vmax.f32 %v140, 0.0
    %v146 = vpack.c.bf16 %v145, %v145
    %v147 = vld [vmem:[#allocation6] sm:$0xf]
    %v148 = vld [vmem:[#allocation6 + $0x4] sm:$0xf]
    %v149 = vld [vmem:[#allocation6 + $0x8] sm:$0xf]
    %v150 = vld [vmem:[#allocation6 + $0xc] sm:$0xf]
    %v151 = vld [vmem:[#allocation6 + $0x10] sm:$0xf]
    %v152 = vld [vmem:[#allocation6 + $0x14] sm:$0xf]
    %v153 = vld [vmem:[#allocation6 + $0x18] sm:$0xf]
    %v154 = vld [vmem:[#allocation6 + $0x1c] sm:$0xf]
    %v155 = vld [vmem:[#allocation6 + $0x20] sm:$0xf]
    %v156 = vld [vmem:[#allocation6 + $0x24] sm:$0xf]
    %v157 = vld [vmem:[#allocation6 + $0x28] sm:$0xf]
    %v158 = vld [vmem:[#allocation6 + $0x2c] sm:$0xf]
    %v159 = vld [vmem:[#allocation6 + $0x30] sm:$0xf]
    %v160 = vld [vmem:[#allocation6 + $0x34] sm:$0xf]
    %v161 = vld [vmem:[#allocation6 + $0x38] sm:$0xf]
    %v162 = vld [vmem:[#allocation6 + $0x3c] sm:$0xf]
    %v163 = vld [vmem:[%s4] sm:$0x1]
    %v165 = vlaneseq
    %v166 = vshrl.u32 %v165, 7
    %v167 = vsub.s32 0, %v166
    %v168 = vrot.slane %v163, %v167
    %v186 = vunpack.c.l.b16 %v147
    %v187 = vunpack.c.l.b16 %v148
    %v188 = vunpack.c.l.b16 %v149
    %v189 = vunpack.c.l.b16 %v150
    %v190 = vunpack.c.l.b16 %v151
    %v191 = vunpack.c.l.b16 %v152
    %v192 = vunpack.c.l.b16 %v153
    %v193 = vunpack.c.l.b16 %v154
    %v194 = vunpack.c.l.b16 %v155
    %v195 = vunpack.c.l.b16 %v156
    %v196 = vunpack.c.l.b16 %v157
    %v197 = vunpack.c.l.b16 %v158
    %v198 = vunpack.c.l.b16 %v159
    %v199 = vunpack.c.l.b16 %v160
    %v200 = vunpack.c.l.b16 %v161
    %v201 = vunpack.c.l.b16 %v162
    %v202 = vpack.c.b16 %v187, %v186
    %v203 = vpack.c.b16 %v189, %v188
    %v204 = vpack.c.b16 %v191, %v190
    %v205 = vpack.c.b16 %v193, %v192
    %v206 = vpack.c.b16 %v195, %v194
    %v207 = vpack.c.b16 %v197, %v196
    %v208 = vpack.c.b16 %v199, %v198
    %v209 = vpack.c.b16 %v201, %v200
    %218 = vmatprep.subr.bf16.mxu0 0
    %219 = vmatpush1.bf16.msra.mxu0 %v202
    %220 = vmatprep.subr.bf16.mxu0 0
    %221 = vmatpush1.bf16.msra.mxu0 %v203
    %222 = vmatprep.subr.bf16.mxu0 0
    %223 = vmatpush1.bf16.msra.mxu0 %v204
    %224 = vmatprep.subr.bf16.mxu0 0
    %225 = vmatpush1.bf16.msra.mxu0 %v205
    %226 = vmatprep.subr.bf16.mxu0 0
    %227 = vmatpush1.bf16.msra.mxu0 %v206
    %228 = vmatprep.subr.bf16.mxu0 0
    %229 = vmatpush1.bf16.msra.mxu0 %v207
    %230 = vmatprep.subr.bf16.mxu0 0
    %231 = vmatpush1.bf16.msra.mxu0 %v208
    %232 = vmatprep.subr.bf16.mxu0 0
    %233 = vmatpush1.bf16.msra.mxu0 %v209
    %234 = vmatprep.subr.bf16.mxu0 0
    %235 = vmatpush1.bf16.msra.mxu0 0
    %236 = vmatprep.subr.bf16.mxu0 0
    %237 = vmatpush1.bf16.msra.mxu0 0
    %238 = vmatprep.subr.bf16.mxu0 0
    %239 = vmatpush1.bf16.msra.mxu0 0
    %240 = vmatprep.subr.bf16.mxu0 0
    %241 = vmatpush1.bf16.msra.mxu0 0
    %242 = vmatprep.subr.bf16.mxu0 0
    %243 = vmatpush1.bf16.msra.mxu0 0
    %244 = vmatprep.subr.bf16.mxu0 0
    %245 = vmatpush1.bf16.msra.mxu0 0
    %246 = vmatprep.subr.bf16.mxu0 0
    %247 = vmatpush1.bf16.msra.mxu0 0
    %248 = vmatprep.subr.bf16.mxu0 0
    %249 = vmatpush1.bf16.msra.mxu0 0
    %250 = vmatprep.mubr.bf16.mxu0 0
    %251 = vmatmul.mubr.bf16.gmra.mrb[0].mxu0 %v146
    %v252 = vpop.f32.mrb[0].mxu0
    %v253 = vadd.f32 %v168, %v252
    %v254 = vpop.f32.mrb[0].mxu0
    %v255 = vpop.f32.mrb[0].mxu0
    %v256 = vpop.f32.mrb[0].mxu0
    %257 = vdwg.mxu0
    %258 = vmax.xlane.f32.xlu0 %v253
    %v259 = vpop.xlane.xlu0 %258
    %v260 = vsub.f32 %v253, %v259
    %v261 = vmul.f32 %v260, 1.442695
    %v262 = vpow.pop %v261
    %263 = vadd.xlane.f32.xlu0 %v262
    %v264 = vpop.xlane.xlu0 %263
    %v265 = vrcp.pop %v264
    %v266 = vmul.f32 %v262, %v265
    %v267 = vpack.c.bf16 %v266, %v266
    %268 = vst [vmem:[%s5] sm:$0xf] %v267
    // Predicated region
    $region34: #{feedforward.1} parent=1 // pred_check
      _
    $region35: #{feedforward.1} parent=1 // pred_check_branch
      %270 = sbr.rel (0) target = $region37
    $region36: #{feedforward.1} parent=1 // pred_region
      _
    $region37: #{feedforward.1} parent=1 // pred_fallthru
      _
    // Predicated region
    $region38: #{feedforward.1} parent=1 // pred_check
      _
    $region39: #{feedforward.1} parent=1 // pred_check_branch
      %272 = sbr.rel (0) target = $region41
    $region40: #{feedforward.1} parent=1 // pred_region
      _
    $region41: #{feedforward.1} parent=1 // pred_fallthru
      _
    %273 = vsyncpa [#allocation3], 1
    %274 = vsyncpa [#allocation5], 1

</llo_original>
